<compile_context>
chip_gen: v7x
topology: tpu7x:2x2x1
jax: 0.10.0
libtpu: 0.0.40
codegen_flags: <defaults>
</compile_context>

<pallas_src>
import jax
import jax.numpy as jnp
from jax.experimental import pallas as pl
from jax.experimental.pallas import tpu as pltpu

_LANE = 128  # lane width of a vreg


def edge_predictor_kernel(x_ref, w1_ref, b1_ref, w2_ref, b2_ref, o_ref):
    # x_ref : (6, TILE_N) f32 VMEM   (feature-major, batch in the lane axis)
    # w1_ref: (24,) f32 SMEM, row-major (6,4):  w1_ref[k*4 + j] = W1T[k, j]
    # b1_ref: (4,)  f32 SMEM
    # w2_ref: (8,)  f32 SMEM, row-major (4,2):  w2_ref[k*2 + j] = W2T[k, j]
    # b2_ref: (2,)  f32 SMEM
    # o_ref : (2, TILE_N) f32 VMEM
    xs = [x_ref[pl.ds(k, 1), :] for k in range(6)]   # 6 lane-dense (1, TILE_N) rows

    # Hidden layer: h_j = relu(b1[j] + sum_k W1T[k, j] * x_k)   (VPU only)
    hs = []
    for j in range(4):
        acc = xs[0] * w1_ref[j] + b1_ref[j]          # bias fused into the init
        for k in range(1, 6):
            acc = acc + xs[k] * w1_ref[k * 4 + j]
        hs.append(jnp.maximum(acc, 0.0))

    # Output layer: y_j = b2[j] + sum_k W2T[k, j] * h_k
    for j in range(2):
        acc = hs[0] * w2_ref[j] + b2_ref[j]
        for k in range(1, 4):
            acc = acc + hs[k] * w2_ref[k * 2 + j]
        o_ref[pl.ds(j, 1), :] = acc                  # lane-dense unmasked store


def edge_predictor(x_edge, w1, b1, w2, b2, *, tile_n=512):
    """Forward pass of EdgePredictor.

    x_edge: (N, 6) f32.
    w1: (6, 4)  (= torch Linear(6,4).weight.T), b1: (4,)
    w2: (4, 2)  (= torch Linear(4,2).weight.T), b2: (2,)
    Returns (N, 2) f32.
    """
    N, f_in = x_edge.shape
    assert f_in == 6
    assert tile_n % _LANE == 0, "tile_n must be a multiple of the 128-lane width"

    # Shrink the tile for small batches (still a multiple of 128 lanes), then
    # pad the batch axis up to a multiple of the tile so every grid step is a
    # full, lane-dense block.
    n_lanes = pl.cdiv(N, _LANE) * _LANE
    tile_n_eff = min(tile_n, n_lanes)
    n_pad = pl.cdiv(N, tile_n_eff) * tile_n_eff

    x_t = x_edge.T                                   # (6, N) feature-major
    if n_pad != N:
        x_t = jnp.pad(x_t, ((0, 0), (0, n_pad - N)))  # zero-pad batch lanes

    w1_flat = w1.reshape(-1)                         # (24,)  row-major [k*4 + j]
    w2_flat = w2.reshape(-1)                         # (8,)   row-major [k*2 + j]

    smem = pl.BlockSpec(memory_space=pltpu.MemorySpace.SMEM)
    out_t = pl.pallas_call(
        edge_predictor_kernel,
        out_shape=jax.ShapeDtypeStruct((2, n_pad), jnp.float32),
        grid_spec=pltpu.PrefetchScalarGridSpec(
            num_scalar_prefetch=0,
            grid=(n_pad // tile_n_eff,),
            in_specs=[
                pl.BlockSpec((6, tile_n_eff), lambda i: (0, i)),  # streamed x tile
                smem, smem, smem, smem,                            # weights/biases
            ],
            out_specs=pl.BlockSpec((2, tile_n_eff), lambda i: (0, i)),
        ),
        compiler_params=pltpu.CompilerParams(
            dimension_semantics=("parallel",),        # megacore sharding
        ),
    )(x_t, w1_flat, b1, w2_flat, b2)

    return out_t[:, :N].T                            # back to (N, 2)


def init_params(key):
    """PyTorch nn.Linear-style init; weights kept pre-transposed as (in, out)."""
    k1, k2, k3, k4 = jax.random.split(key, 4)
    bound1 = 1.0 / jnp.sqrt(6.0)
    bound2 = 1.0 / jnp.sqrt(4.0)
    w1 = jax.random.uniform(k1, (6, 4), jnp.float32, -bound1, bound1)
    b1 = jax.random.uniform(k2, (4,), jnp.float32, -bound1, bound1)
    w2 = jax.random.uniform(k3, (4, 2), jnp.float32, -bound2, bound2)
    b2 = jax.random.uniform(k4, (2,), jnp.float32, -bound2, bound2)
    return w1, b1, w2, b2


def reference(x, w1, b1, w2, b2):
    h = jnp.maximum(x @ w1 + b1, 0.0)
    return h @ w2 + b2


if __name__ == "__main__":
    key = jax.random.PRNGKey(0)
    k_x, k_x2, k_p = jax.random.split(key, 3)
    w1, b1, w2, b2 = init_params(k_p)

    # Small batch (N=8): padded to one 128-lane tile, single grid step,
    # exercised through the Pallas kernel itself.
    x_small = jax.random.normal(k_x, (8, 6), jnp.float32)
    out_small = jax.block_until_ready(edge_predictor(x_small, w1, b1, w2, b2))
    assert out_small.shape == (8, 2)
    assert jnp.allclose(out_small, reference(x_small, w1, b1, w2, b2),
                        atol=1e-5, rtol=1e-5)

    # Larger batch: multi-step grid (2048 / 512 = 4 lane-dense tiles).
    N, tile_n = 2048, 512
    x_edge = jax.random.normal(k_x2, (N, 6), jnp.float32)
    out = jax.block_until_ready(edge_predictor(x_edge, w1, b1, w2, b2, tile_n=tile_n))
    assert out.shape == (N, 2)
    assert jnp.allclose(out, reference(x_edge, w1, b1, w2, b2),
                        atol=1e-5, rtol=1e-5)

    print("KERNEL_OK")
</pallas_src>

<mosaic_0001>
module attributes {stable_mosaic.version = 11 : i64} {
  func.func @edge_predictor_kernel(%arg0: i32, %arg1: memref<6x128xf32, #tpu.memory_space<vmem>>, %arg2: memref<24xf32, #tpu.memory_space<smem>>, %arg3: memref<4xf32, #tpu.memory_space<smem>>, %arg4: memref<8xf32, #tpu.memory_space<smem>>, %arg5: memref<2xf32, #tpu.memory_space<smem>>, %arg6: memref<2x128xf32, #tpu.memory_space<vmem>>) attributes {dimension_semantics = [#tpu.dimension_semantics<parallel>], iteration_bounds = array<i64: 1>, scalar_prefetch = 0 : i64, scratch_operands = 0 : i64, tpu.core_type = #tpu.core_type<tc>, window_params = [{transform_indices = @transform_0, window_bounds = array<i64: 6, 128>}, {transform_indices = @transform_1, window_bounds = array<i64: 24>}, {transform_indices = @transform_2, window_bounds = array<i64: 4>}, {transform_indices = @transform_3, window_bounds = array<i64: 8>}, {transform_indices = @transform_4, window_bounds = array<i64: 2>}, {transform_indices = @transform_5, window_bounds = array<i64: 2, 128>}]} {
    %c0 = arith.constant 0 : index
    %c0_0 = arith.constant 0 : index
    %0 = vector.load %arg1[%c0, %c0_0] : memref<6x128xf32, #tpu.memory_space<vmem>>, vector<1x128xf32>
    %c1 = arith.constant 1 : index
    %c0_1 = arith.constant 0 : index
    %1 = vector.load %arg1[%c1, %c0_1] : memref<6x128xf32, #tpu.memory_space<vmem>>, vector<1x128xf32>
    %c2 = arith.constant 2 : index
    %c0_2 = arith.constant 0 : index
    %2 = vector.load %arg1[%c2, %c0_2] : memref<6x128xf32, #tpu.memory_space<vmem>>, vector<1x128xf32>
    %c3 = arith.constant 3 : index
    %c0_3 = arith.constant 0 : index
    %3 = vector.load %arg1[%c3, %c0_3] : memref<6x128xf32, #tpu.memory_space<vmem>>, vector<1x128xf32>
    %c4 = arith.constant 4 : index
    %c0_4 = arith.constant 0 : index
    %4 = vector.load %arg1[%c4, %c0_4] : memref<6x128xf32, #tpu.memory_space<vmem>>, vector<1x128xf32>
    %c5 = arith.constant 5 : index
    %c0_5 = arith.constant 0 : index
    %5 = vector.load %arg1[%c5, %c0_5] : memref<6x128xf32, #tpu.memory_space<vmem>>, vector<1x128xf32>
    %c0_6 = arith.constant 0 : index
    %6 = memref.load %arg2[%c0_6] : memref<24xf32, #tpu.memory_space<smem>>
    %7 = vector.broadcast %6 : f32 to vector<1x128xf32>
    %8 = arith.mulf %0, %7 : vector<1x128xf32>
    %c0_7 = arith.constant 0 : index
    %9 = memref.load %arg3[%c0_7] : memref<4xf32, #tpu.memory_space<smem>>
    %10 = vector.broadcast %9 : f32 to vector<1x128xf32>
    %11 = arith.addf %8, %10 : vector<1x128xf32>
    %c4_8 = arith.constant 4 : index
    %12 = memref.load %arg2[%c4_8] : memref<24xf32, #tpu.memory_space<smem>>
    %13 = vector.broadcast %12 : f32 to vector<1x128xf32>
    %14 = arith.mulf %1, %13 : vector<1x128xf32>
    %15 = arith.addf %11, %14 : vector<1x128xf32>
    %c8 = arith.constant 8 : index
    %16 = memref.load %arg2[%c8] : memref<24xf32, #tpu.memory_space<smem>>
    %17 = vector.broadcast %16 : f32 to vector<1x128xf32>
    %18 = arith.mulf %2, %17 : vector<1x128xf32>
    %19 = arith.addf %15, %18 : vector<1x128xf32>
    %c12 = arith.constant 12 : index
    %20 = memref.load %arg2[%c12] : memref<24xf32, #tpu.memory_space<smem>>
    %21 = vector.broadcast %20 : f32 to vector<1x128xf32>
    %22 = arith.mulf %3, %21 : vector<1x128xf32>
    %23 = arith.addf %19, %22 : vector<1x128xf32>
    %c16 = arith.constant 16 : index
    %24 = memref.load %arg2[%c16] : memref<24xf32, #tpu.memory_space<smem>>
    %25 = vector.broadcast %24 : f32 to vector<1x128xf32>
    %26 = arith.mulf %4, %25 : vector<1x128xf32>
    %27 = arith.addf %23, %26 : vector<1x128xf32>
    %c20 = arith.constant 20 : index
    %28 = memref.load %arg2[%c20] : memref<24xf32, #tpu.memory_space<smem>>
    %29 = vector.broadcast %28 : f32 to vector<1x128xf32>
    %30 = arith.mulf %5, %29 : vector<1x128xf32>
    %31 = arith.addf %27, %30 : vector<1x128xf32>
    %cst = arith.constant 0.000000e+00 : f32
    %32 = vector.broadcast %cst : f32 to vector<1x128xf32>
    %33 = arith.maximumf %31, %32 : vector<1x128xf32>
    %c1_9 = arith.constant 1 : index
    %34 = memref.load %arg2[%c1_9] : memref<24xf32, #tpu.memory_space<smem>>
    %35 = vector.broadcast %34 : f32 to vector<1x128xf32>
    %36 = arith.mulf %0, %35 : vector<1x128xf32>
    %c1_10 = arith.constant 1 : index
    %37 = memref.load %arg3[%c1_10] : memref<4xf32, #tpu.memory_space<smem>>
    %38 = vector.broadcast %37 : f32 to vector<1x128xf32>
    %39 = arith.addf %36, %38 : vector<1x128xf32>
    %c5_11 = arith.constant 5 : index
    %40 = memref.load %arg2[%c5_11] : memref<24xf32, #tpu.memory_space<smem>>
    %41 = vector.broadcast %40 : f32 to vector<1x128xf32>
    %42 = arith.mulf %1, %41 : vector<1x128xf32>
    %43 = arith.addf %39, %42 : vector<1x128xf32>
    %c9 = arith.constant 9 : index
    %44 = memref.load %arg2[%c9] : memref<24xf32, #tpu.memory_space<smem>>
    %45 = vector.broadcast %44 : f32 to vector<1x128xf32>
    %46 = arith.mulf %2, %45 : vector<1x128xf32>
    %47 = arith.addf %43, %46 : vector<1x128xf32>
    %c13 = arith.constant 13 : index
    %48 = memref.load %arg2[%c13] : memref<24xf32, #tpu.memory_space<smem>>
    %49 = vector.broadcast %48 : f32 to vector<1x128xf32>
    %50 = arith.mulf %3, %49 : vector<1x128xf32>
    %51 = arith.addf %47, %50 : vector<1x128xf32>
    %c17 = arith.constant 17 : index
    %52 = memref.load %arg2[%c17] : memref<24xf32, #tpu.memory_space<smem>>
    %53 = vector.broadcast %52 : f32 to vector<1x128xf32>
    %54 = arith.mulf %4, %53 : vector<1x128xf32>
    %55 = arith.addf %51, %54 : vector<1x128xf32>
    %c21 = arith.constant 21 : index
    %56 = memref.load %arg2[%c21] : memref<24xf32, #tpu.memory_space<smem>>
    %57 = vector.broadcast %56 : f32 to vector<1x128xf32>
    %58 = arith.mulf %5, %57 : vector<1x128xf32>
    %59 = arith.addf %55, %58 : vector<1x128xf32>
    %cst_12 = arith.constant 0.000000e+00 : f32
    %60 = vector.broadcast %cst_12 : f32 to vector<1x128xf32>
    %61 = arith.maximumf %59, %60 : vector<1x128xf32>
    %c2_13 = arith.constant 2 : index
    %62 = memref.load %arg2[%c2_13] : memref<24xf32, #tpu.memory_space<smem>>
    %63 = vector.broadcast %62 : f32 to vector<1x128xf32>
    %64 = arith.mulf %0, %63 : vector<1x128xf32>
    %c2_14 = arith.constant 2 : index
    %65 = memref.load %arg3[%c2_14] : memref<4xf32, #tpu.memory_space<smem>>
    %66 = vector.broadcast %65 : f32 to vector<1x128xf32>
    %67 = arith.addf %64, %66 : vector<1x128xf32>
    %c6 = arith.constant 6 : index
    %68 = memref.load %arg2[%c6] : memref<24xf32, #tpu.memory_space<smem>>
    %69 = vector.broadcast %68 : f32 to vector<1x128xf32>
    %70 = arith.mulf %1, %69 : vector<1x128xf32>
    %71 = arith.addf %67, %70 : vector<1x128xf32>
    %c10 = arith.constant 10 : index
    %72 = memref.load %arg2[%c10] : memref<24xf32, #tpu.memory_space<smem>>
    %73 = vector.broadcast %72 : f32 to vector<1x128xf32>
    %74 = arith.mulf %2, %73 : vector<1x128xf32>
    %75 = arith.addf %71, %74 : vector<1x128xf32>
    %c14 = arith.constant 14 : index
    %76 = memref.load %arg2[%c14] : memref<24xf32, #tpu.memory_space<smem>>
    %77 = vector.broadcast %76 : f32 to vector<1x128xf32>
    %78 = arith.mulf %3, %77 : vector<1x128xf32>
    %79 = arith.addf %75, %78 : vector<1x128xf32>
    %c18 = arith.constant 18 : index
    %80 = memref.load %arg2[%c18] : memref<24xf32, #tpu.memory_space<smem>>
    %81 = vector.broadcast %80 : f32 to vector<1x128xf32>
    %82 = arith.mulf %4, %81 : vector<1x128xf32>
    %83 = arith.addf %79, %82 : vector<1x128xf32>
    %c22 = arith.constant 22 : index
    %84 = memref.load %arg2[%c22] : memref<24xf32, #tpu.memory_space<smem>>
    %85 = vector.broadcast %84 : f32 to vector<1x128xf32>
    %86 = arith.mulf %5, %85 : vector<1x128xf32>
    %87 = arith.addf %83, %86 : vector<1x128xf32>
    %cst_15 = arith.constant 0.000000e+00 : f32
    %88 = vector.broadcast %cst_15 : f32 to vector<1x128xf32>
    %89 = arith.maximumf %87, %88 : vector<1x128xf32>
    %c3_16 = arith.constant 3 : index
    %90 = memref.load %arg2[%c3_16] : memref<24xf32, #tpu.memory_space<smem>>
    %91 = vector.broadcast %90 : f32 to vector<1x128xf32>
    %92 = arith.mulf %0, %91 : vector<1x128xf32>
    %c3_17 = arith.constant 3 : index
    %93 = memref.load %arg3[%c3_17] : memref<4xf32, #tpu.memory_space<smem>>
    %94 = vector.broadcast %93 : f32 to vector<1x128xf32>
    %95 = arith.addf %92, %94 : vector<1x128xf32>
    %c7 = arith.constant 7 : index
    %96 = memref.load %arg2[%c7] : memref<24xf32, #tpu.memory_space<smem>>
    %97 = vector.broadcast %96 : f32 to vector<1x128xf32>
    %98 = arith.mulf %1, %97 : vector<1x128xf32>
    %99 = arith.addf %95, %98 : vector<1x128xf32>
    %c11 = arith.constant 11 : index
    %100 = memref.load %arg2[%c11] : memref<24xf32, #tpu.memory_space<smem>>
    %101 = vector.broadcast %100 : f32 to vector<1x128xf32>
    %102 = arith.mulf %2, %101 : vector<1x128xf32>
    %103 = arith.addf %99, %102 : vector<1x128xf32>
    %c15 = arith.constant 15 : index
    %104 = memref.load %arg2[%c15] : memref<24xf32, #tpu.memory_space<smem>>
    %105 = vector.broadcast %104 : f32 to vector<1x128xf32>
    %106 = arith.mulf %3, %105 : vector<1x128xf32>
    %107 = arith.addf %103, %106 : vector<1x128xf32>
    %c19 = arith.constant 19 : index
    %108 = memref.load %arg2[%c19] : memref<24xf32, #tpu.memory_space<smem>>
    %109 = vector.broadcast %108 : f32 to vector<1x128xf32>
    %110 = arith.mulf %4, %109 : vector<1x128xf32>
    %111 = arith.addf %107, %110 : vector<1x128xf32>
    %c23 = arith.constant 23 : index
    %112 = memref.load %arg2[%c23] : memref<24xf32, #tpu.memory_space<smem>>
    %113 = vector.broadcast %112 : f32 to vector<1x128xf32>
    %114 = arith.mulf %5, %113 : vector<1x128xf32>
    %115 = arith.addf %111, %114 : vector<1x128xf32>
    %cst_18 = arith.constant 0.000000e+00 : f32
    %116 = vector.broadcast %cst_18 : f32 to vector<1x128xf32>
    %117 = arith.maximumf %115, %116 : vector<1x128xf32>
    %c0_19 = arith.constant 0 : index
    %118 = memref.load %arg4[%c0_19] : memref<8xf32, #tpu.memory_space<smem>>
    %119 = vector.broadcast %118 : f32 to vector<1x128xf32>
    %120 = arith.mulf %33, %119 : vector<1x128xf32>
    %c0_20 = arith.constant 0 : index
    %121 = memref.load %arg5[%c0_20] : memref<2xf32, #tpu.memory_space<smem>>
    %122 = vector.broadcast %121 : f32 to vector<1x128xf32>
    %123 = arith.addf %120, %122 : vector<1x128xf32>
    %c2_21 = arith.constant 2 : index
    %124 = memref.load %arg4[%c2_21] : memref<8xf32, #tpu.memory_space<smem>>
    %125 = vector.broadcast %124 : f32 to vector<1x128xf32>
    %126 = arith.mulf %61, %125 : vector<1x128xf32>
    %127 = arith.addf %123, %126 : vector<1x128xf32>
    %c4_22 = arith.constant 4 : index
    %128 = memref.load %arg4[%c4_22] : memref<8xf32, #tpu.memory_space<smem>>
    %129 = vector.broadcast %128 : f32 to vector<1x128xf32>
    %130 = arith.mulf %89, %129 : vector<1x128xf32>
    %131 = arith.addf %127, %130 : vector<1x128xf32>
    %c6_23 = arith.constant 6 : index
    %132 = memref.load %arg4[%c6_23] : memref<8xf32, #tpu.memory_space<smem>>
    %133 = vector.broadcast %132 : f32 to vector<1x128xf32>
    %134 = arith.mulf %117, %133 : vector<1x128xf32>
    %135 = arith.addf %131, %134 : vector<1x128xf32>
    %c0_24 = arith.constant 0 : index
    %c0_25 = arith.constant 0 : index
    %136 = vector.load %arg6[%c0_24, %c0_25] : memref<2x128xf32, #tpu.memory_space<vmem>>, vector<1x128xf32>
    tpu.vector_store %arg6[%c0_24, %c0_25], %135 {strides = array<i32>} : memref<2x128xf32, #tpu.memory_space<vmem>>, vector<1x128xf32>,
    %c1_26 = arith.constant 1 : index
    %137 = memref.load %arg4[%c1_26] : memref<8xf32, #tpu.memory_space<smem>>
    %138 = vector.broadcast %137 : f32 to vector<1x128xf32>
    %139 = arith.mulf %33, %138 : vector<1x128xf32>
    %c1_27 = arith.constant 1 : index
    %140 = memref.load %arg5[%c1_27] : memref<2xf32, #tpu.memory_space<smem>>
    %141 = vector.broadcast %140 : f32 to vector<1x128xf32>
    %142 = arith.addf %139, %141 : vector<1x128xf32>
    %c3_28 = arith.constant 3 : index
    %143 = memref.load %arg4[%c3_28] : memref<8xf32, #tpu.memory_space<smem>>
    %144 = vector.broadcast %143 : f32 to vector<1x128xf32>
    %145 = arith.mulf %61, %144 : vector<1x128xf32>
    %146 = arith.addf %142, %145 : vector<1x128xf32>
    %c5_29 = arith.constant 5 : index
    %147 = memref.load %arg4[%c5_29] : memref<8xf32, #tpu.memory_space<smem>>
    %148 = vector.broadcast %147 : f32 to vector<1x128xf32>
    %149 = arith.mulf %89, %148 : vector<1x128xf32>
    %150 = arith.addf %146, %149 : vector<1x128xf32>
    %c7_30 = arith.constant 7 : index
    %151 = memref.load %arg4[%c7_30] : memref<8xf32, #tpu.memory_space<smem>>
    %152 = vector.broadcast %151 : f32 to vector<1x128xf32>
    %153 = arith.mulf %117, %152 : vector<1x128xf32>
    %154 = arith.addf %150, %153 : vector<1x128xf32>
    %c1_31 = arith.constant 1 : index
    %c0_32 = arith.constant 0 : index
    %155 = vector.load %arg6[%c1_31, %c0_32] : memref<2x128xf32, #tpu.memory_space<vmem>>, vector<1x128xf32>
    tpu.vector_store %arg6[%c1_31, %c0_32], %154 {strides = array<i32>} : memref<2x128xf32, #tpu.memory_space<vmem>>, vector<1x128xf32>,
    return
  }
  func.func @transform_0(%arg0: i32) -> (i32, i32) {
    %c0_i32 = arith.constant 0 : i32
    %c0_i32_0 = arith.constant 0 : i32
    return %c0_i32, %arg0 : i32, i32
  }
  func.func @transform_1(%arg0: i32) -> i32 {
    %c0_i32 = arith.constant 0 : i32
    %c0_i32_0 = arith.constant 0 : i32
    return %c0_i32 : i32
  }
  func.func @transform_2(%arg0: i32) -> i32 {
    %c0_i32 = arith.constant 0 : i32
    %c0_i32_0 = arith.constant 0 : i32
    return %c0_i32 : i32
  }
  func.func @transform_3(%arg0: i32) -> i32 {
    %c0_i32 = arith.constant 0 : i32
    %c0_i32_0 = arith.constant 0 : i32
    return %c0_i32 : i32
  }
  func.func @transform_4(%arg0: i32) -> i32 {
    %c0_i32 = arith.constant 0 : i32
    %c0_i32_0 = arith.constant 0 : i32
    return %c0_i32 : i32
  }
  func.func @transform_5(%arg0: i32) -> (i32, i32) {
    %c0_i32 = arith.constant 0 : i32
    %c0_i32_0 = arith.constant 0 : i32
    return %c0_i32, %arg0 : i32, i32
  }
}

</mosaic_0001>

<llo_original>
// kernel: tpu_custom_call.1
$region0: #{tpu_custom_call.1}
  #allocation0 [shape = 'u32[]', space=smem, size = 0x4, offset = 0x4, fixed_abs, tag = 'smem constant byte address 0x4 - core index']
  #allocation1 [shape = 'u32[144,128]{1,0:T(1,128)}', space=vmem, size = 0x12000, scoped, tag = 'internal scratch']
  %s0 = inlined_call_operand.hbm [shape: f32[6,128], index: 0, kind: input, shape index: {}]
  %s1 = inlined_call_operand.vmem [shape: f32[24], index: 1, kind: input, shape index: {}]
  %s2 = inlined_call_operand.vmem [shape: f32[4], index: 2, kind: input, shape index: {}]
  %s3 = inlined_call_operand.vmem [shape: f32[8], index: 3, kind: input, shape index: {}]
  %s4 = inlined_call_operand.vmem [shape: f32[2], index: 4, kind: input, shape index: {}]
  %s5 = inlined_call_operand.hbm [shape: f32[2,128], index: 5, kind: output, shape index: {}]
  %s6 = sld [smem:[#allocation0]]
  $region50: #{tpu_custom_call.1} parent=0
    _
  %s8 = ssub.s32 1, %s6
  %s9 = scalar_select 0, %s8, %s6
  $region1: #{tpu_custom_call.1} parent=0
    #allocation2 [shape = 'u8[4096]{0}', space=vmem, size = 0x1000, scoped, tag = 'input window, operand 0, single buffered']
    #allocation3 [shape = 's32[1]{0}', space=sflag, size = 0x4, scoped, tag = 'scoped memory for tpu_custom_call.1']
    #allocation4 [shape = 's32[1]{0}', space=sflag, size = 0x4, scoped, tag = 'scoped memory for tpu_custom_call.1']
    #allocation5 [shape = 's32[1]{0}', space=sflag, size = 0x4, scoped, tag = 'scoped memory for tpu_custom_call.1']
    #allocation6 [shape = 'u8[512]{0}', space=smem, size = 0x200, scoped, tag = 'input window, operand 1, single buffered']
    #allocation7 [shape = 'u8[512]{0}', space=smem, size = 0x200, scoped, tag = 'input window, operand 2, single buffered']
    #allocation8 [shape = 's32[1]{0}', space=sflag, size = 0x4, scoped, tag = 'scoped memory for tpu_custom_call.1']
    #allocation9 [shape = 'u8[512]{0}', space=smem, size = 0x200, scoped, tag = 'input window, operand 3, single buffered']
    #allocation10 [shape = 'u8[512]{0}', space=smem, size = 0x200, scoped, tag = 'input window, operand 4, single buffered']
    #allocation11 [shape = 's32[1]{0}', space=sflag, size = 0x4, scoped, tag = 'scoped memory for tpu_custom_call.1']
    #allocation12 [shape = 'u8[1024]{0}', space=vmem, size = 0x400, scoped, tag = 'output window, operand 0, single buffered']
    %10 = vsyncpa [#allocation3], 0
    %11 = vsyncpa [#allocation5], 0
    %12 = vsyncpa [#allocation8], 0
    %13 = vsyncpa [#allocation11], 0
    %14 = vsyncpa [#allocation4], 0
    // Predicated region
    $region2: #{tpu_custom_call.1} parent=1 // pred_check
      _
    $region3: #{tpu_custom_call.1} parent=1 // pred_check_branch
      %16 = sbr.rel (0) target = $region5
    $region4: #{tpu_custom_call.1} parent=1 // pred_region
      %s18 = ssub.s32 128, 128
      %19 = vsyncadd [#allocation3], %s18
      %s21 = sshll.u32 [#allocation2], 4
      %s22 = int_to_ptr.vmem [resolvable:$true] %s21
      %24 = dma.hbm_to_vmem [thread:$0]  %s0, 128, %s22, [#allocation3]
    $region5: #{tpu_custom_call.1} parent=1 // pred_fallthru
      _
    // Predicated region
    $region6: #{tpu_custom_call.1} parent=1 // pred_check
      _
    $region7: #{tpu_custom_call.1} parent=1 // pred_check_branch
      %26 = sbr.rel (0) target = $region9
    $region8: #{tpu_custom_call.1} parent=1 // pred_region
      %s28 = ssub.s32 16, 16
      %29 = vsyncadd [#allocation5], %s28
      %s31 = sshll.u32 %s1, 4
      %s32 = int_to_ptr.vmem [resolvable:$true] %s31
      %34 = dma.vmem_to_smem %s32, 16, [#allocation6], [#allocation5]
    $region9: #{tpu_custom_call.1} parent=1 // pred_fallthru
      _
    // Predicated region
    $region10: #{tpu_custom_call.1} parent=1 // pred_check
      _
    $region11: #{tpu_custom_call.1} parent=1 // pred_check_branch
      %36 = sbr.rel (0) target = $region13
    $region12: #{tpu_custom_call.1} parent=1 // pred_region
      %s38 = ssub.s32 16, 16
      %39 = vsyncadd [#allocation8], %s38
      %s41 = sshll.u32 %s2, 4
      %s42 = int_to_ptr.vmem [resolvable:$true] %s41
      %44 = dma.vmem_to_smem %s42, 16, [#allocation7], [#allocation8]
    $region13: #{tpu_custom_call.1} parent=1 // pred_fallthru
      _
    // Predicated region
    $region14: #{tpu_custom_call.1} parent=1 // pred_check
      _
    $region15: #{tpu_custom_call.1} parent=1 // pred_check_branch
      %46 = sbr.rel (0) target = $region17
    $region16: #{tpu_custom_call.1} parent=1 // pred_region
      %s48 = ssub.s32 16, 16
      %49 = vsyncadd [#allocation8], %s48
      %s51 = sshll.u32 %s3, 4
      %s52 = int_to_ptr.vmem [resolvable:$true] %s51
      %54 = dma.vmem_to_smem %s52, 16, [#allocation9], [#allocation8]
    $region17: #{tpu_custom_call.1} parent=1 // pred_fallthru
      _
    // Predicated region
    $region18: #{tpu_custom_call.1} parent=1 // pred_check
      _
    $region19: #{tpu_custom_call.1} parent=1 // pred_check_branch
      %56 = sbr.rel (0) target = $region21
    $region20: #{tpu_custom_call.1} parent=1 // pred_region
      %s58 = ssub.s32 16, 16
      %59 = vsyncadd [#allocation11], %s58
      %s61 = sshll.u32 %s4, 4
      %s62 = int_to_ptr.vmem [resolvable:$true] %s61
      %64 = dma.vmem_to_smem %s62, 16, [#allocation10], [#allocation11]
    $region21: #{tpu_custom_call.1} parent=1 // pred_fallthru
      _
    // Predicated region
    $region22: #{tpu_custom_call.1} parent=1 // pred_check
      _
    $region23: #{tpu_custom_call.1} parent=1 // pred_check_branch
      %66 = sbr.rel (0) target = $region25
    $region24: #{tpu_custom_call.1} parent=1 // pred_region
      %67 = dma.done [#allocation3], 128
    $region25: #{tpu_custom_call.1} parent=1 // pred_fallthru
      _
    // Predicated region
    $region26: #{tpu_custom_call.1} parent=1 // pred_check
      _
    $region27: #{tpu_custom_call.1} parent=1 // pred_check_branch
      %69 = sbr.rel (0) target = $region29
    $region28: #{tpu_custom_call.1} parent=1 // pred_region
      %70 = dma.done [#allocation5], 16
    $region29: #{tpu_custom_call.1} parent=1 // pred_fallthru
      _
    // Predicated region
    $region30: #{tpu_custom_call.1} parent=1 // pred_check
      _
    $region31: #{tpu_custom_call.1} parent=1 // pred_check_branch
      %72 = sbr.rel (0) target = $region33
    $region32: #{tpu_custom_call.1} parent=1 // pred_region
      %73 = dma.done [#allocation8], 16
    $region33: #{tpu_custom_call.1} parent=1 // pred_fallthru
      _
    // Predicated region
    $region34: #{tpu_custom_call.1} parent=1 // pred_check
      _
    $region35: #{tpu_custom_call.1} parent=1 // pred_check_branch
      %75 = sbr.rel (0) target = $region37
    $region36: #{tpu_custom_call.1} parent=1 // pred_region
      %76 = dma.done [#allocation8], 16
    $region37: #{tpu_custom_call.1} parent=1 // pred_fallthru
      _
    // Predicated region
    $region38: #{tpu_custom_call.1} parent=1 // pred_check
      _
    $region39: #{tpu_custom_call.1} parent=1 // pred_check_branch
      %78 = sbr.rel (0) target = $region41
    $region40: #{tpu_custom_call.1} parent=1 // pred_region
      %79 = dma.done [#allocation11], 16
    $region41: #{tpu_custom_call.1} parent=1 // pred_fallthru
      _
    %80 = sfence
    %v81 = vld [vmem:[#allocation2] sm:$0x1]
    %v82 = vld [vmem:[#allocation2 + $0x1] sm:$0x1]
    %v83 = vld [vmem:[#allocation2 + $0x2] sm:$0x1]
    %v84 = vld [vmem:[#allocation2 + $0x3] sm:$0x1]
    %v85 = vld [vmem:[#allocation2 + $0x4] sm:$0x1]
    %v86 = vld [vmem:[#allocation2 + $0x5] sm:$0x1]
    %s87 = sld [smem:[#allocation6]]
    %v88 = vstv %s87
    %v89 = vmul.f32 %v81, %v88
    %s90 = sld [smem:[#allocation7]]
    %v91 = vstv %s90
    %v92 = vadd.f32 %v89, %v91
    %s93 = sld [smem:[#allocation6 + $0x4]]
    %v94 = vstv %s93
    %v95 = vmul.f32 %v82, %v94
    %v96 = vadd.f32 %v92, %v95
    %s97 = sld [smem:[#allocation6 + $0x8]]
    %v98 = vstv %s97
    %v99 = vmul.f32 %v83, %v98
    %v100 = vadd.f32 %v96, %v99
    %s101 = sld [smem:[#allocation6 + $0xc]]
    %v102 = vstv %s101
    %v103 = vmul.f32 %v84, %v102
    %v104 = vadd.f32 %v100, %v103
    %s105 = sld [smem:[#allocation6 + $0x10]]
    %v106 = vstv %s105
    %v107 = vmul.f32 %v85, %v106
    %v108 = vadd.f32 %v104, %v107
    %s109 = sld [smem:[#allocation6 + $0x14]]
    %v110 = vstv %s109
    %v111 = vmul.f32 %v86, %v110
    %v112 = vadd.f32 %v108, %v111
    %v113 = vmax.f32 %v112, 0.0
    %s114 = sld [smem:[#allocation6 + $0x1]]
    %v115 = vstv %s114
    %v116 = vmul.f32 %v81, %v115
    %s117 = sld [smem:[#allocation7 + $0x1]]
    %v118 = vstv %s117
    %v119 = vadd.f32 %v116, %v118
    %s120 = sld [smem:[#allocation6 + $0x5]]
    %v121 = vstv %s120
    %v122 = vmul.f32 %v82, %v121
    %v123 = vadd.f32 %v119, %v122
    %s124 = sld [smem:[#allocation6 + $0x9]]
    %v125 = vstv %s124
    %v126 = vmul.f32 %v83, %v125
    %v127 = vadd.f32 %v123, %v126
    %s128 = sld [smem:[#allocation6 + $0xd]]
    %v129 = vstv %s128
    %v130 = vmul.f32 %v84, %v129
    %v131 = vadd.f32 %v127, %v130
    %s132 = sld [smem:[#allocation6 + $0x11]]
    %v133 = vstv %s132
    %v134 = vmul.f32 %v85, %v133
    %v135 = vadd.f32 %v131, %v134
    %s136 = sld [smem:[#allocation6 + $0x15]]
    %v137 = vstv %s136
    %v138 = vmul.f32 %v86, %v137
    %v139 = vadd.f32 %v135, %v138
    %v140 = vmax.f32 %v139, 0.0
    %s141 = sld [smem:[#allocation6 + $0x2]]
    %v142 = vstv %s141
    %v143 = vmul.f32 %v81, %v142
    %s144 = sld [smem:[#allocation7 + $0x2]]
    %v145 = vstv %s144
    %v146 = vadd.f32 %v143, %v145
    %s147 = sld [smem:[#allocation6 + $0x6]]
    %v148 = vstv %s147
    %v149 = vmul.f32 %v82, %v148
    %v150 = vadd.f32 %v146, %v149
    %s151 = sld [smem:[#allocation6 + $0xa]]
    %v152 = vstv %s151
    %v153 = vmul.f32 %v83, %v152
    %v154 = vadd.f32 %v150, %v153
    %s155 = sld [smem:[#allocation6 + $0xe]]
    %v156 = vstv %s155
    %v157 = vmul.f32 %v84, %v156
    %v158 = vadd.f32 %v154, %v157
    %s159 = sld [smem:[#allocation6 + $0x12]]
    %v160 = vstv %s159
    %v161 = vmul.f32 %v85, %v160
    %v162 = vadd.f32 %v158, %v161
    %s163 = sld [smem:[#allocation6 + $0x16]]
    %v164 = vstv %s163
    %v165 = vmul.f32 %v86, %v164
    %v166 = vadd.f32 %v162, %v165
    %v167 = vmax.f32 %v166, 0.0
    %s168 = sld [smem:[#allocation6 + $0x3]]
    %v169 = vstv %s168
    %v170 = vmul.f32 %v81, %v169
    %s171 = sld [smem:[#allocation7 + $0x3]]
    %v172 = vstv %s171
    %v173 = vadd.f32 %v170, %v172
    %s174 = sld [smem:[#allocation6 + $0x7]]
    %v175 = vstv %s174
    %v176 = vmul.f32 %v82, %v175
    %v177 = vadd.f32 %v173, %v176
    %s178 = sld [smem:[#allocation6 + $0xb]]
    %v179 = vstv %s178
    %v180 = vmul.f32 %v83, %v179
    %v181 = vadd.f32 %v177, %v180
    %s182 = sld [smem:[#allocation6 + $0xf]]
    %v183 = vstv %s182
    %v184 = vmul.f32 %v84, %v183
    %v185 = vadd.f32 %v181, %v184
    %s186 = sld [smem:[#allocation6 + $0x13]]
    %v187 = vstv %s186
    %v188 = vmul.f32 %v85, %v187
    %v189 = vadd.f32 %v185, %v188
    %s190 = sld [smem:[#allocation6 + $0x17]]
    %v191 = vstv %s190
    %v192 = vmul.f32 %v86, %v191
    %v193 = vadd.f32 %v189, %v192
    %v194 = vmax.f32 %v193, 0.0
    %s195 = sld [smem:[#allocation9]]
    %v196 = vstv %s195
    %v197 = vmul.f32 %v113, %v196
    %s198 = sld [smem:[#allocation10]]
    %v199 = vstv %s198
    %v200 = vadd.f32 %v197, %v199
    %s201 = sld [smem:[#allocation9 + $0x2]]
    %v202 = vstv %s201
    %v203 = vmul.f32 %v140, %v202
    %v204 = vadd.f32 %v200, %v203
    %s205 = sld [smem:[#allocation9 + $0x4]]
    %v206 = vstv %s205
    %v207 = vmul.f32 %v167, %v206
    %v208 = vadd.f32 %v204, %v207
    %s209 = sld [smem:[#allocation9 + $0x6]]
    %v210 = vstv %s209
    %v211 = vmul.f32 %v194, %v210
    %v212 = vadd.f32 %v208, %v211
    %213 = vst [vmem:[#allocation12] sm:$0x1] %v212
    %s214 = sld [smem:[#allocation9 + $0x1]]
    %v215 = vstv %s214
    %v216 = vmul.f32 %v113, %v215
    %s217 = sld [smem:[#allocation10 + $0x1]]
    %v218 = vstv %s217
    %v219 = vadd.f32 %v216, %v218
    %s220 = sld [smem:[#allocation9 + $0x3]]
    %v221 = vstv %s220
    %v222 = vmul.f32 %v140, %v221
    %v223 = vadd.f32 %v219, %v222
    %s224 = sld [smem:[#allocation9 + $0x5]]
    %v225 = vstv %s224
    %v226 = vmul.f32 %v167, %v225
    %v227 = vadd.f32 %v223, %v226
    %s228 = sld [smem:[#allocation9 + $0x7]]
    %v229 = vstv %s228
    %v230 = vmul.f32 %v194, %v229
    %v231 = vadd.f32 %v227, %v230
    %232 = vst [vmem:[#allocation12 + $0x1] sm:$0x1] %v231
    // Predicated region
    $region42: #{tpu_custom_call.1} parent=1 // pred_check
      _
    $region43: #{tpu_custom_call.1} parent=1 // pred_check_branch
      %234 = sbr.rel (0) target = $region45
    $region44: #{tpu_custom_call.1} parent=1 // pred_region
      %s236 = ssub.s32 32, 32
      %237 = vsyncadd [#allocation4], %s236
      %s239 = sshll.u32 [#allocation12], 4
      %s240 = int_to_ptr.vmem [resolvable:$true] %s239
      %242 = dma.vmem_to_hbm [thread:$0]  %s240, 32, %s5, [#allocation4]
    $region45: #{tpu_custom_call.1} parent=1 // pred_fallthru
      _
    // Predicated region
    $region46: #{tpu_custom_call.1} parent=1 // pred_check
      _
    $region47: #{tpu_custom_call.1} parent=1 // pred_check_branch
      %244 = sbr.rel (0) target = $region49
    $region48: #{tpu_custom_call.1} parent=1 // pred_region
      %245 = dma.done [#allocation4], 32
    $region49: #{tpu_custom_call.1} parent=1 // pred_fallthru
      _
    %246 = vsyncpa [#allocation3], 1
    %247 = vsyncpa [#allocation4], 1
    %248 = vsyncpa [#allocation5], 1
    %249 = vsyncpa [#allocation8], 1
    %250 = vsyncpa [#allocation11], 1

</llo_original>
